<compile_context>
chip_gen: v6e
topology: v6e:2x2x1
jax: 0.10.0
libtpu: 0.0.40
codegen_flags: <defaults>
</compile_context>

<pallas_src>
import functools

import numpy as np
import jax
import jax.numpy as jnp
from jax.experimental import pallas as pl
from jax.experimental.pallas import tpu as pltpu


def _round_up(x, m):
    return ((x + m - 1) // m) * m


# ----------------------------------------------------------------------------
# Pallas kernel: one M-tile of the [M_pad, T_pad] cost matrix
# ----------------------------------------------------------------------------
def _matcher_cost_kernel(logits_ref, pfeat_ref, onehot_ref, tfeat_ref, c_ref,
                         *, w_class, w_bbox, w_giou):
    eps = 1e-7

    # ---- class cost: -w_class * softmax(logits)[:, tgt_ids] ----------------
    logits = logits_ref[...].astype(jnp.float32)                    # [tm, Cp]
    mx = jnp.max(logits, axis=-1, keepdims=True)
    e = jnp.exp(logits - mx)                                        # [tm, Cp]
    # Exact divide for the per-row denominator: O(tm) work, removes the
    # largest systematic error feeding the tie-sensitive Hungarian solver.
    row_scale = (-w_class) / jnp.sum(e, axis=-1, keepdims=True)     # [tm, 1]

    # MXU gather: bf16 one-hot (precomputed, resident), f32 accumulate.
    gathered = jnp.dot(e.astype(jnp.bfloat16), onehot_ref[...],
                       preferred_element_type=jnp.float32)          # [tm, Tp]
    cost = gathered * row_scale                                     # = w_class * cost_class

    # ---- precomputed box features -------------------------------------------
    # rows/cols: 0..3 = cxcywh, 4..7 = x1 y1 x2 y2, 8 = area
    pf = pfeat_ref[...].astype(jnp.float32)                         # [tm, 9]
    tf = tfeat_ref[...].astype(jnp.float32)                         # [9, Tp]

    # ---- bbox L1 cost: cdist(pred, tgt, p=1) on cxcywh -----------------------
    l1 = jnp.abs(pf[:, 0:1] - tf[0:1, :])                           # k=0 term
    for k in range(1, 4):
        l1 = l1 + jnp.abs(pf[:, k:k + 1] - tf[k:k + 1, :])          # [tm, Tp]

    # ---- generalized IoU cost -------------------------------------------------
    px1, py1, px2, py2 = pf[:, 4:5], pf[:, 5:6], pf[:, 6:7], pf[:, 7:8]
    area_p = pf[:, 8:9]
    tx1, ty1, tx2, ty2 = tf[4:5, :], tf[5:6, :], tf[6:7, :], tf[7:8, :]
    area_t = tf[8:9, :]

    ix1 = jnp.maximum(px1, tx1)
    iy1 = jnp.maximum(py1, ty1)
    ix2 = jnp.minimum(px2, tx2)
    iy2 = jnp.minimum(py2, ty2)
    inter = jnp.maximum(ix2 - ix1, 0.0) * jnp.maximum(iy2 - iy1, 0.0)

    union = area_p + area_t - inter
    iou = inter * pl.reciprocal(union + eps, approx=True)           # EUP

    # smallest enclosing box (ex2>=ex1, ey2>=ey1 by construction: no clamp)
    ex1 = jnp.minimum(px1, tx1)
    ey1 = jnp.minimum(py1, ty1)
    ex2 = jnp.maximum(px2, tx2)
    ey2 = jnp.maximum(py2, ty2)
    area_e = (ex2 - ex1) * (ey2 - ey1)

    cost_giou = (area_e - union) * pl.reciprocal(area_e + eps, approx=True) - iou

    c_ref[...] = (cost + w_bbox * l1 + w_giou * cost_giou).astype(c_ref.dtype)


# ----------------------------------------------------------------------------
# Tiling / VMEM budgeting helpers (generation aware)
# ----------------------------------------------------------------------------
def _vmem_limit_bytes():
    """Generation-aware scoped-VMEM limit: v7x has 64 MiB, v5e/v6e have 128 MiB."""
    try:
        info = pltpu.get_tpu_info()
        cap = int(getattr(info, "vmem_capacity_bytes", 64 << 20))
    except Exception:
        cap = 64 << 20                       # conservative (v7x-safe) fallback
    if cap <= (64 << 20):
        return 40 << 20                      # v7x: leave headroom under 64 MiB
    return 96 << 20                          # v5e/v6e: plenty under 128 MiB


def _pick_tm(M8, C_pad, T_pad, logits_itemsize, vmem_limit):
    """Largest tm (multiple of 8) that divides M8, fits the VMEM budget,
    and leaves >=2 grid steps (so v7x can shard the parallel M axis)."""
    budget = int(vmem_limit * 0.7)
    per_row = (2 * C_pad * logits_itemsize   # double-buffered logits tile
               + 2 * 128 * 4                 # pred-feature tile (lane-padded)
               + 2 * T_pad * 4               # double-buffered output tile
               + 8 * T_pad * 4)              # GIoU / softmax f32 temporaries
    cap = budget // per_row
    cap = min(cap, 2048)                     # diminishing returns past ~1-2K rows
    if M8 >= 16:
        cap = min(cap, M8 // 2)              # keep >=2 grid steps
    cap = max(8, (cap // 8) * 8)
    tm = 8
    d = 8
    while d <= cap:
        if M8 % d == 0:
            tm = d
        d += 8
    return tm


# ----------------------------------------------------------------------------
# Wrapper: pad (M -> M8, C -> C_pad, T -> T_pad), tile over M, slice back
# ----------------------------------------------------------------------------
def matcher_cost_matrix(pred_class, pred_bbox, tgt_ids, tgt_bbox,
                        cost_class=1.0, cost_bbox=1.0, cost_giou=1.0,
                        tile_m=None):
    """Returns C of shape [B, N, T_total] (float32)."""
    B, N, num_class = pred_class.shape
    M = B * N
    T = int(tgt_ids.shape[0])

    # Lane-dense paddings (multiples of 128 lanes).
    T_pad = max(128, _round_up(T, 128))
    C_pad = max(128, _round_up(num_class, 128))
    M8 = _round_up(M, 8)

    vmem_limit = _vmem_limit_bytes()
    logits_itemsize = jnp.dtype(pred_class.dtype).itemsize
    tm = _pick_tm(M8, C_pad, T_pad, logits_itemsize, vmem_limit)
    if tile_m is not None:
        tm = min(tm, max(8, (int(tile_m) // 8) * 8))
        while M8 % tm != 0:
            tm -= 8

    # --- logits: keep native dtype (no upcast copy); pad classes with -1e9 so
    # exp -> 0 and the softmax denominator is unchanged.
    logits = pred_class.reshape(M, num_class)
    if C_pad != num_class or M8 != M:
        logits = jnp.pad(logits, ((0, M8 - M), (0, C_pad - num_class)),
                         constant_values=-1e9)

    # --- pred box features [M8, 9]: cxcywh, xyxy, area (hoisted O(M) math)
    p = pred_bbox.reshape(M, 4).astype(jnp.float32)
    px1 = p[:, 0] - 0.5 * p[:, 2]
    py1 = p[:, 1] - 0.5 * p[:, 3]
    px2 = p[:, 0] + 0.5 * p[:, 2]
    py2 = p[:, 1] + 0.5 * p[:, 3]
    area_p = (px2 - px1) * (py2 - py1)
    pfeat = jnp.concatenate(
        [p, jnp.stack([px1, py1, px2, py2, area_p], axis=-1)], axis=-1)  # [M, 9]
    if M8 != M:
        pfeat = jnp.pad(pfeat, ((0, M8 - M), (0, 0)))

    # --- target box features [9, T_pad] (dummy non-degenerate boxes in padding)
    dummy = jnp.broadcast_to(jnp.array([0.5, 0.5, 1.0, 1.0], jnp.float32),
                             (T_pad, 4))
    tb = dummy.at[:T, :].set(tgt_bbox.astype(jnp.float32))
    tx1 = tb[:, 0] - 0.5 * tb[:, 2]
    ty1 = tb[:, 1] - 0.5 * tb[:, 3]
    tx2 = tb[:, 0] + 0.5 * tb[:, 2]
    ty2 = tb[:, 1] + 0.5 * tb[:, 3]
    area_t = (tx2 - tx1) * (ty2 - ty1)
    tfeat = jnp.stack([tb[:, 0], tb[:, 1], tb[:, 2], tb[:, 3],
                       tx1, ty1, tx2, ty2, area_t], axis=0)              # [9, T_pad]

    # --- grid-invariant one-hot [C_pad, T_pad] bf16 (padded cols all-zero)
    tids_p = jnp.full((T_pad,), -1, jnp.int32).at[:T].set(tgt_ids.astype(jnp.int32))
    onehot = (jnp.arange(C_pad, dtype=jnp.int32)[:, None] == tids_p[None, :]
              ).astype(jnp.bfloat16)                                     # [C_pad, T_pad]

    kernel = functools.partial(_matcher_cost_kernel,
                               w_class=float(cost_class),
                               w_bbox=float(cost_bbox),
                               w_giou=float(cost_giou))

    # Advisory cost estimate for XLA scheduling around the kernel.
    ce = pl.CostEstimate(
        flops=2 * M8 * C_pad * T_pad + 40 * M8 * T_pad,
        transcendentals=M8 * C_pad + 2 * M8 * T_pad,
        bytes_accessed=(M8 * C_pad * logits_itemsize
                        + 4 * (M8 * 9 + 9 * T_pad)
                        + 2 * C_pad * T_pad
                        + 4 * M8 * T_pad),
    )

    c = pl.pallas_call(
        kernel,
        out_shape=jax.ShapeDtypeStruct((M8, T_pad), jnp.float32),
        grid=(M8 // tm,),
        in_specs=[
            pl.BlockSpec((tm, C_pad), lambda i: (i, 0)),       # logits tile
            pl.BlockSpec((tm, 9), lambda i: (i, 0)),           # pred box features tile
            pl.BlockSpec((C_pad, T_pad), lambda i: (0, 0)),    # one-hot (resident)
            pl.BlockSpec((9, T_pad), lambda i: (0, 0)),        # target features (resident)
        ],
        out_specs=pl.BlockSpec((tm, T_pad), lambda i: (i, 0)),
        compiler_params=pltpu.CompilerParams(
            dimension_semantics=("parallel",),   # shard M tiles across TCs (v7x)
            vmem_limit_bytes=vmem_limit,
        ),
        cost_estimate=ce,
    )(logits, pfeat, onehot, tfeat)

    return c[:M, :T].reshape(B, N, T)


# ----------------------------------------------------------------------------
# Host-side Hungarian (Jonker-Volgenant shortest augmenting path), numpy only.
# ----------------------------------------------------------------------------
def linear_sum_assignment_np(cost):
    cost = np.asarray(cost, dtype=np.float64)
    transposed = False
    if cost.shape[0] > cost.shape[1]:
        cost = cost.T
        transposed = True
    n, m = cost.shape
    INF = float("inf")
    u = np.zeros(n + 1)
    v = np.zeros(m + 1)
    p = np.zeros(m + 1, dtype=int)
    way = np.zeros(m + 1, dtype=int)
    for i in range(1, n + 1):
        p[0] = i
        j0 = 0
        minv = np.full(m + 1, INF)
        used = np.zeros(m + 1, dtype=bool)
        while True:
            used[j0] = True
            i0 = p[j0]
            delta, j1 = INF, -1
            for j in range(1, m + 1):
                if not used[j]:
                    cur = cost[i0 - 1, j - 1] - u[i0] - v[j]
                    if cur < minv[j]:
                        minv[j] = cur
                        way[j] = j0
                    if minv[j] < delta:
                        delta = minv[j]
                        j1 = j
            for j in range(m + 1):
                if used[j]:
                    u[p[j]] += delta
                    v[j] -= delta
                else:
                    minv[j] -= delta
            j0 = j1
            if p[j0] == 0:
                break
        while True:
            j1 = way[j0]
            p[j0] = p[j1]
            j0 = j1
            if j0 == 0:
                break
    rows, cols = [], []
    for j in range(1, m + 1):
        if p[j] != 0:
            rows.append(p[j] - 1)
            cols.append(j - 1)
    rows = np.asarray(rows, dtype=np.int64)
    cols = np.asarray(cols, dtype=np.int64)
    if transposed:
        rows, cols = cols, rows
    order = np.argsort(rows)
    return rows[order].astype(np.int32), cols[order].astype(np.int32)


# ----------------------------------------------------------------------------
# Full HungarianMatcher forward
# ----------------------------------------------------------------------------
def hungarian_matcher_forward(preds, targets,
                              cost_class=1.0, cost_bbox=1.0, cost_giou=1.0):
    tgt_ids = jnp.concatenate([t["classes"] for t in targets], axis=0)
    tgt_bbox = jnp.concatenate([t["bboxes"] for t in targets], axis=0)

    C = matcher_cost_matrix(preds["pred_class"], preds["pred_bbox"],
                            tgt_ids, tgt_bbox,
                            cost_class, cost_bbox, cost_giou)
    C = np.asarray(jax.device_get(C))                              # [B, N, T_total]

    sizes = [int(t["bboxes"].shape[0]) for t in targets]
    indices = []
    offset = 0
    for i, sz in enumerate(sizes):
        c_i = C[i, :, offset:offset + sz]
        indices.append(linear_sum_assignment_np(c_i))
        offset += sz
    return [(np.asarray(r, np.int32), np.asarray(c, np.int32)) for r, c in indices]


# ----------------------------------------------------------------------------
# Pure-JAX reference for the cost matrix (sanity check of kernel math)
# ----------------------------------------------------------------------------
def _cost_matrix_ref(pred_class, pred_bbox, tgt_ids, tgt_bbox, wc, wb, wg):
    B, N, _ = pred_class.shape
    probs = jax.nn.softmax(pred_class.reshape(B * N, -1).astype(jnp.float32), axis=-1)
    cost_class = -probs[:, tgt_ids]
    p = pred_bbox.reshape(B * N, 4)
    t = tgt_bbox
    cost_bbox = jnp.abs(p[:, None, :] - t[None, :, :]).sum(-1)

    def to_xyxy(b):
        cx, cy, w, h = b[..., 0], b[..., 1], b[..., 2], b[..., 3]
        return jnp.stack([cx - w / 2, cy - h / 2, cx + w / 2, cy + h / 2], -1)

    pb, tb = to_xyxy(p), to_xyxy(t)
    area_p = (pb[:, 2] - pb[:, 0]) * (pb[:, 3] - pb[:, 1])
    area_t = (tb[:, 2] - tb[:, 0]) * (tb[:, 3] - tb[:, 1])
    lt = jnp.maximum(pb[:, None, :2], tb[None, :, :2])
    rb = jnp.minimum(pb[:, None, 2:], tb[None, :, 2:])
    wh = jnp.maximum(rb - lt, 0.0)
    inter = wh[..., 0] * wh[..., 1]
    union = area_p[:, None] + area_t[None, :] - inter
    iou = inter / union
    elt = jnp.minimum(pb[:, None, :2], tb[None, :, :2])
    erb = jnp.maximum(pb[:, None, 2:], tb[None, :, 2:])
    ewh = jnp.maximum(erb - elt, 0.0)
    area_e = ewh[..., 0] * ewh[..., 1]
    giou = iou - (area_e - union) / area_e
    return (wc * cost_class + wb * cost_bbox - wg * giou).reshape(B, N, -1)


# ----------------------------------------------------------------------------
if __name__ == "__main__":
    key = jax.random.PRNGKey(0)
    B, N, num_class = 2, 8, 32
    sizes = [3, 4]

    k1, k2, k3, k4, k5, k6 = jax.random.split(key, 6)

    def rand_boxes(k, n):
        ka, kb = jax.random.split(k)
        cxy = jax.random.uniform(ka, (n, 2), minval=0.2, maxval=0.8)
        wh = jax.random.uniform(kb, (n, 2), minval=0.1, maxval=0.4)
        return jnp.concatenate([cxy, wh], axis=-1).astype(jnp.float32)

    preds = {
        "pred_class": jax.random.normal(k1, (B, N, num_class), dtype=jnp.float32),
        "pred_bbox": rand_boxes(k2, B * N).reshape(B, N, 4),
    }
    targets = [
        {"classes": jax.random.randint(k3, (sizes[0],), 0, num_class, dtype=jnp.int32),
         "bboxes": rand_boxes(k4, sizes[0])},
        {"classes": jax.random.randint(k5, (sizes[1],), 0, num_class, dtype=jnp.int32),
         "bboxes": rand_boxes(k6, sizes[1])},
    ]

    # Run the Pallas cost-matrix kernel and block on the result.
    tgt_ids = jnp.concatenate([t["classes"] for t in targets], 0)
    tgt_bbox = jnp.concatenate([t["bboxes"] for t in targets], 0)
    C_kernel = matcher_cost_matrix(preds["pred_class"], preds["pred_bbox"],
                                   tgt_ids, tgt_bbox, 1.0, 1.0, 1.0)
    C_kernel = jax.block_until_ready(C_kernel)

    # Sanity-check against a pure-JAX reference. Tolerance slightly loosened
    # for EUP approx reciprocals (GIoU path) and the bf16 one-hot matmul.
    C_ref = _cost_matrix_ref(preds["pred_class"], preds["pred_bbox"],
                             tgt_ids, tgt_bbox, 1.0, 1.0, 1.0)
    np.testing.assert_allclose(np.asarray(C_kernel), np.asarray(C_ref),
                               rtol=2e-2, atol=2e-2)

    # Full matcher forward (kernel cost matrix + host Hungarian).
    indices = hungarian_matcher_forward(preds, targets)
    for r, c in indices:
        assert r.dtype == np.int32 and c.dtype == np.int32
        assert len(r) == len(c)

    print("KERNEL_OK")
</pallas_src>

<mosaic_0001>
module attributes {stable_mosaic.version = 11 : i64} {
  func.func @_matcher_cost_kernel(%arg0: i32, %arg1: memref<8x128xf32, #tpu.memory_space<vmem>>, %arg2: memref<8x9xf32, #tpu.memory_space<vmem>>, %arg3: memref<128x128xbf16, #tpu.memory_space<vmem>>, %arg4: memref<9x128xf32, #tpu.memory_space<vmem>>, %arg5: memref<8x128xf32, #tpu.memory_space<vmem>>) attributes {dimension_semantics = [#tpu.dimension_semantics<parallel>], iteration_bounds = array<i64: 2>, scalar_prefetch = 0 : i64, scratch_operands = 0 : i64, tpu.core_type = #tpu.core_type<tc>, window_params = [{transform_indices = @transform_0, window_bounds = array<i64: 8, 128>}, {transform_indices = @transform_1, window_bounds = array<i64: 8, 9>}, {pipeline_mode = #tpu.pipeline_mode<synchronous>, transform_indices = @transform_2, window_bounds = array<i64: 128, 128>}, {pipeline_mode = #tpu.pipeline_mode<synchronous>, transform_indices = @transform_3, window_bounds = array<i64: 9, 128>}, {transform_indices = @transform_4, window_bounds = array<i64: 8, 128>}]} {
    %c0 = arith.constant 0 : index
    %c0_0 = arith.constant 0 : index
    %0 = vector.load %arg1[%c0, %c0_0] : memref<8x128xf32, #tpu.memory_space<vmem>>, vector<8x128xf32>
    %cst = arith.constant dense<0xFF800000> : vector<8xf32>
    %1 = vector.multi_reduction <maximumf>, %0, %cst [1] : vector<8x128xf32> to vector<8xf32>
    %2 = vector.shape_cast %1 : vector<8xf32> to vector<8x1xf32>
    %3 = vector.broadcast %2 : vector<8x1xf32> to vector<8x128xf32>
    %4 = arith.subf %0, %3 : vector<8x128xf32>
    %5 = math.exp %4 : vector<8x128xf32>
    %cst_1 = arith.constant dense<0.000000e+00> : vector<8xf32>
    %6 = vector.multi_reduction <add>, %5, %cst_1 [1] : vector<8x128xf32> to vector<8xf32>
    %7 = vector.shape_cast %6 : vector<8xf32> to vector<8x1xf32>
    %cst_2 = arith.constant -1.000000e+00 : f32
    %8 = vector.broadcast %cst_2 : f32 to vector<8x1xf32>
    %9 = arith.divf %8, %7 : vector<8x1xf32>
    %10 = arith.truncf %5 : vector<8x128xf32> to vector<8x128xbf16>
    %c0_3 = arith.constant 0 : index
    %c0_4 = arith.constant 0 : index
    %11 = vector.load %arg3[%c0_3, %c0_4] : memref<128x128xbf16, #tpu.memory_space<vmem>>, vector<128x128xbf16>
    %cst_5 = arith.constant dense<0.000000e+00> : vector<8x128xf32>
    %12 = tpu.matmul %10, %11, %cst_5 {dimension_numbers = #tpu.dot_dimension_numbers<[1], [0], [0], [1], [0, 0, 1, 1], [], []>} : vector<8x128xbf16>, vector<128x128xbf16>, vector<8x128xf32> -> vector<8x128xf32>
    %13 = vector.broadcast %9 : vector<8x1xf32> to vector<8x128xf32>
    %14 = arith.mulf %12, %13 : vector<8x128xf32>
    %c0_6 = arith.constant 0 : index
    %c0_7 = arith.constant 0 : index
    %15 = vector.load %arg2[%c0_6, %c0_7] : memref<8x9xf32, #tpu.memory_space<vmem>>, vector<8x9xf32>
    %c0_8 = arith.constant 0 : index
    %c0_9 = arith.constant 0 : index
    %16 = vector.load %arg4[%c0_8, %c0_9] : memref<9x128xf32, #tpu.memory_space<vmem>>, vector<9x128xf32>
    %17 = vector.extract_strided_slice %15 {offsets = [0, 0], sizes = [8, 1], strides = [1, 1]} : vector<8x9xf32> to vector<8x1xf32>
    %18 = vector.extract_strided_slice %16 {offsets = [0, 0], sizes = [1, 128], strides = [1, 1]} : vector<9x128xf32> to vector<1x128xf32>
    %19 = vector.broadcast %17 : vector<8x1xf32> to vector<8x128xf32>
    %20 = vector.broadcast %18 : vector<1x128xf32> to vector<8x128xf32>
    %21 = arith.subf %19, %20 : vector<8x128xf32>
    %22 = math.absf %21 : vector<8x128xf32>
    %23 = vector.extract_strided_slice %15 {offsets = [0, 1], sizes = [8, 1], strides = [1, 1]} : vector<8x9xf32> to vector<8x1xf32>
    %24 = vector.extract_strided_slice %16 {offsets = [1, 0], sizes = [1, 128], strides = [1, 1]} : vector<9x128xf32> to vector<1x128xf32>
    %25 = vector.broadcast %23 : vector<8x1xf32> to vector<8x128xf32>
    %26 = vector.broadcast %24 : vector<1x128xf32> to vector<8x128xf32>
    %27 = arith.subf %25, %26 : vector<8x128xf32>
    %28 = math.absf %27 : vector<8x128xf32>
    %29 = arith.addf %22, %28 : vector<8x128xf32>
    %30 = vector.extract_strided_slice %15 {offsets = [0, 2], sizes = [8, 1], strides = [1, 1]} : vector<8x9xf32> to vector<8x1xf32>
    %31 = vector.extract_strided_slice %16 {offsets = [2, 0], sizes = [1, 128], strides = [1, 1]} : vector<9x128xf32> to vector<1x128xf32>
    %32 = vector.broadcast %30 : vector<8x1xf32> to vector<8x128xf32>
    %33 = vector.broadcast %31 : vector<1x128xf32> to vector<8x128xf32>
    %34 = arith.subf %32, %33 : vector<8x128xf32>
    %35 = math.absf %34 : vector<8x128xf32>
    %36 = arith.addf %29, %35 : vector<8x128xf32>
    %37 = vector.extract_strided_slice %15 {offsets = [0, 3], sizes = [8, 1], strides = [1, 1]} : vector<8x9xf32> to vector<8x1xf32>
    %38 = vector.extract_strided_slice %16 {offsets = [3, 0], sizes = [1, 128], strides = [1, 1]} : vector<9x128xf32> to vector<1x128xf32>
    %39 = vector.broadcast %37 : vector<8x1xf32> to vector<8x128xf32>
    %40 = vector.broadcast %38 : vector<1x128xf32> to vector<8x128xf32>
    %41 = arith.subf %39, %40 : vector<8x128xf32>
    %42 = math.absf %41 : vector<8x128xf32>
    %43 = arith.addf %36, %42 : vector<8x128xf32>
    %44 = vector.extract_strided_slice %15 {offsets = [0, 4], sizes = [8, 1], strides = [1, 1]} : vector<8x9xf32> to vector<8x1xf32>
    %45 = vector.extract_strided_slice %15 {offsets = [0, 5], sizes = [8, 1], strides = [1, 1]} : vector<8x9xf32> to vector<8x1xf32>
    %46 = vector.extract_strided_slice %15 {offsets = [0, 6], sizes = [8, 1], strides = [1, 1]} : vector<8x9xf32> to vector<8x1xf32>
    %47 = vector.extract_strided_slice %15 {offsets = [0, 7], sizes = [8, 1], strides = [1, 1]} : vector<8x9xf32> to vector<8x1xf32>
    %48 = vector.extract_strided_slice %15 {offsets = [0, 8], sizes = [8, 1], strides = [1, 1]} : vector<8x9xf32> to vector<8x1xf32>
    %49 = vector.extract_strided_slice %16 {offsets = [4, 0], sizes = [1, 128], strides = [1, 1]} : vector<9x128xf32> to vector<1x128xf32>
    %50 = vector.extract_strided_slice %16 {offsets = [5, 0], sizes = [1, 128], strides = [1, 1]} : vector<9x128xf32> to vector<1x128xf32>
    %51 = vector.extract_strided_slice %16 {offsets = [6, 0], sizes = [1, 128], strides = [1, 1]} : vector<9x128xf32> to vector<1x128xf32>
    %52 = vector.extract_strided_slice %16 {offsets = [7, 0], sizes = [1, 128], strides = [1, 1]} : vector<9x128xf32> to vector<1x128xf32>
    %53 = vector.extract_strided_slice %16 {offsets = [8, 0], sizes = [1, 128], strides = [1, 1]} : vector<9x128xf32> to vector<1x128xf32>
    %54 = vector.broadcast %44 : vector<8x1xf32> to vector<8x128xf32>
    %55 = vector.broadcast %49 : vector<1x128xf32> to vector<8x128xf32>
    %56 = arith.maximumf %54, %55 : vector<8x128xf32>
    %57 = vector.broadcast %45 : vector<8x1xf32> to vector<8x128xf32>
    %58 = vector.broadcast %50 : vector<1x128xf32> to vector<8x128xf32>
    %59 = arith.maximumf %57, %58 : vector<8x128xf32>
    %60 = vector.broadcast %46 : vector<8x1xf32> to vector<8x128xf32>
    %61 = vector.broadcast %51 : vector<1x128xf32> to vector<8x128xf32>
    %62 = arith.minimumf %60, %61 : vector<8x128xf32>
    %63 = vector.broadcast %47 : vector<8x1xf32> to vector<8x128xf32>
    %64 = vector.broadcast %52 : vector<1x128xf32> to vector<8x128xf32>
    %65 = arith.minimumf %63, %64 : vector<8x128xf32>
    %66 = arith.subf %62, %56 : vector<8x128xf32>
    %cst_10 = arith.constant 0.000000e+00 : f32
    %67 = vector.broadcast %cst_10 : f32 to vector<8x128xf32>
    %68 = arith.maximumf %66, %67 : vector<8x128xf32>
    %69 = arith.subf %65, %59 : vector<8x128xf32>
    %cst_11 = arith.constant 0.000000e+00 : f32
    %70 = vector.broadcast %cst_11 : f32 to vector<8x128xf32>
    %71 = arith.maximumf %69, %70 : vector<8x128xf32>
    %72 = arith.mulf %68, %71 : vector<8x128xf32>
    %73 = vector.broadcast %48 : vector<8x1xf32> to vector<8x128xf32>
    %74 = vector.broadcast %53 : vector<1x128xf32> to vector<8x128xf32>
    %75 = arith.addf %73, %74 : vector<8x128xf32>
    %76 = arith.subf %75, %72 : vector<8x128xf32>
    %cst_12 = arith.constant 1.000000e-07 : f32
    %77 = vector.broadcast %cst_12 : f32 to vector<8x128xf32>
    %78 = arith.addf %76, %77 : vector<8x128xf32>
    %79 = tpu.reciprocal %78 {approx = true} : vector<8x128xf32> -> vector<8x128xf32>
    %80 = arith.mulf %72, %79 : vector<8x128xf32>
    %81 = vector.broadcast %44 : vector<8x1xf32> to vector<8x128xf32>
    %82 = vector.broadcast %49 : vector<1x128xf32> to vector<8x128xf32>
    %83 = arith.minimumf %81, %82 : vector<8x128xf32>
    %84 = vector.broadcast %45 : vector<8x1xf32> to vector<8x128xf32>
    %85 = vector.broadcast %50 : vector<1x128xf32> to vector<8x128xf32>
    %86 = arith.minimumf %84, %85 : vector<8x128xf32>
    %87 = vector.broadcast %46 : vector<8x1xf32> to vector<8x128xf32>
    %88 = vector.broadcast %51 : vector<1x128xf32> to vector<8x128xf32>
    %89 = arith.maximumf %87, %88 : vector<8x128xf32>
    %90 = vector.broadcast %47 : vector<8x1xf32> to vector<8x128xf32>
    %91 = vector.broadcast %52 : vector<1x128xf32> to vector<8x128xf32>
    %92 = arith.maximumf %90, %91 : vector<8x128xf32>
    %93 = arith.subf %89, %83 : vector<8x128xf32>
    %94 = arith.subf %92, %86 : vector<8x128xf32>
    %95 = arith.mulf %93, %94 : vector<8x128xf32>
    %96 = arith.subf %95, %76 : vector<8x128xf32>
    %cst_13 = arith.constant 1.000000e-07 : f32
    %97 = vector.broadcast %cst_13 : f32 to vector<8x128xf32>
    %98 = arith.addf %95, %97 : vector<8x128xf32>
    %99 = tpu.reciprocal %98 {approx = true} : vector<8x128xf32> -> vector<8x128xf32>
    %100 = arith.mulf %96, %99 : vector<8x128xf32>
    %101 = arith.subf %100, %80 : vector<8x128xf32>
    %cst_14 = arith.constant 1.000000e+00 : f32
    %102 = vector.broadcast %cst_14 : f32 to vector<8x128xf32>
    %103 = arith.mulf %102, %43 : vector<8x128xf32>
    %104 = arith.addf %14, %103 : vector<8x128xf32>
    %cst_15 = arith.constant 1.000000e+00 : f32
    %105 = vector.broadcast %cst_15 : f32 to vector<8x128xf32>
    %106 = arith.mulf %105, %101 : vector<8x128xf32>
    %107 = arith.addf %104, %106 : vector<8x128xf32>
    %c0_16 = arith.constant 0 : index
    %c0_17 = arith.constant 0 : index
    %108 = vector.load %arg5[%c0_16, %c0_17] : memref<8x128xf32, #tpu.memory_space<vmem>>, vector<8x128xf32>
    tpu.vector_store %arg5[%c0_16, %c0_17], %107 {strides = array<i32>} : memref<8x128xf32, #tpu.memory_space<vmem>>, vector<8x128xf32>,
    return
  }
  func.func @transform_0(%arg0: i32) -> (i32, i32) {
    %c0_i32 = arith.constant 0 : i32
    %c0_i32_0 = arith.constant 0 : i32
    return %arg0, %c0_i32 : i32, i32
  }
  func.func @transform_1(%arg0: i32) -> (i32, i32) {
    %c0_i32 = arith.constant 0 : i32
    %c0_i32_0 = arith.constant 0 : i32
    return %arg0, %c0_i32 : i32, i32
  }
  func.func @transform_2(%arg0: i32) -> (i32, i32) {
    %c0_i32 = arith.constant 0 : i32
    %c0_i32_0 = arith.constant 0 : i32
    %c0_i32_1 = arith.constant 0 : i32
    return %c0_i32, %c0_i32_0 : i32, i32
  }
  func.func @transform_3(%arg0: i32) -> (i32, i32) {
    %c0_i32 = arith.constant 0 : i32
    %c0_i32_0 = arith.constant 0 : i32
    %c0_i32_1 = arith.constant 0 : i32
    return %c0_i32, %c0_i32_0 : i32, i32
  }
  func.func @transform_4(%arg0: i32) -> (i32, i32) {
    %c0_i32 = arith.constant 0 : i32
    %c0_i32_0 = arith.constant 0 : i32
    return %arg0, %c0_i32 : i32, i32
  }
}

</mosaic_0001>

<llo_original>
// kernel: tpu_custom_call.1
$region0: #{tpu_custom_call.1}
  #allocation0 [shape = 'u32[]', space=smem, size = 0x4, offset = 0x4, fixed_abs, tag = 'smem constant byte address 0x4 - core index']
  #allocation1 [shape = 'u32[144,128]{1,0:T(1,128)}', space=vmem, size = 0x12000, scoped, tag = 'internal scratch']
  %s0 = inlined_call_operand.hbm [shape: f32[16,128], index: 0, kind: input, shape index: {}]
  %s1 = inlined_call_operand.hbm [shape: f32[16,9], index: 1, kind: input, shape index: {}]
  %s2 = inlined_call_operand.hbm [shape: bf16[128,128], index: 2, kind: input, shape index: {}]
  %s3 = inlined_call_operand.hbm [shape: f32[9,128], index: 3, kind: input, shape index: {}]
  %s4 = inlined_call_operand.hbm [shape: f32[16,128], index: 4, kind: output, shape index: {}]
  %s5 = sld [smem:[#allocation0]]
  $region65: #{tpu_custom_call.1} parent=0
    _
  %s7 = ssub.s32 1, %s5
  %s8 = scalar_select 0, %s7, %s5
  $region1: #{tpu_custom_call.1} parent=0
    #allocation2 [shape = 'u8[8192]{0}', space=vmem, size = 0x2000, scoped, tag = 'input window, operand 0']
    #allocation3 [shape = 's32[2]{0}', space=sflag, size = 0x8, scoped, tag = 'scoped memory for tpu_custom_call.1']
    #allocation4 [shape = 's32[2]{0}', space=sflag, size = 0x8, scoped, tag = 'scoped memory for tpu_custom_call.1']
    #allocation5 [shape = 'u8[8192]{0}', space=vmem, size = 0x2000, scoped, tag = 'input window, operand 1']
    #allocation6 [shape = 's32[2]{0}', space=sflag, size = 0x8, scoped, tag = 'scoped memory for tpu_custom_call.1']
    #allocation7 [shape = 'u8[32768]{0}', space=vmem, size = 0x8000, scoped, tag = 'input window, operand 2, single buffered']
    #allocation8 [shape = 'u8[8192]{0}', space=vmem, size = 0x2000, scoped, tag = 'input window, operand 3, single buffered']
    #allocation9 [shape = 's32[1]{0}', space=sflag, size = 0x4, scoped, tag = 'scoped memory for tpu_custom_call.1']
    #allocation10 [shape = 'u8[8192]{0}', space=vmem, size = 0x2000, scoped, tag = 'output window, operand 0']
    %9 = vsyncpa [#allocation3], 0
    %s10 = scalar_lea.sflag [#allocation3], 1
    %11 = vsyncpa %s10, 0
    %12 = vsyncpa [#allocation6], 0
    %s13 = scalar_lea.sflag [#allocation6], 1
    %14 = vsyncpa %s13, 0
    %15 = vsyncpa [#allocation9], 0
    %16 = vsyncpa [#allocation4], 0
    %s17 = scalar_lea.sflag [#allocation4], 1
    %18 = vsyncpa %s17, 0
    loop: start=0, step=1, limit=4
    $region2: #{tpu_custom_call.1} parent=1 // loop_pre_header
      _
    $region3: #{tpu_custom_call.1} parent=1 // loop_header
      %s20 = sphi 0, %s24
      %p21 = scmp.ge.s32.totalorder %s20, 4
      %s30 = sphi 0, %s32
      %s33 = sphi 0, %s30
      %s34 = sphi 0, %s33
      %s50 = sphi 0, %s34
      %s56 = sphi 0, %s58
      %s59 = sphi 0, %s56
      %s60 = sphi 0, %s59
      %s76 = sphi 0, %s60
      %s80 = sphi 0, %s80
      %s82 = sphi 0, %s80
      %s83 = sphi 0, %s82
      %s97 = sphi 0, %s83
      %s101 = sphi 0, %s101
      %s103 = sphi 0, %s101
      %s104 = sphi 0, %s103
      %s118 = sphi 0, %s104
      %s124 = sphi 0, %s126
      %s127 = sphi 0, %s124
      %s128 = sphi 0, %s127
      %s144 = sphi 0, %s128
    $region4: #{tpu_custom_call.1} parent=1 // loop_header_branch
      %23 = sbr.rel (%p21) target = $region8
    $region5: #{tpu_custom_call.1} parent=1 // loop_body
      %s25 = ssub.s32 %s20, 1
      %s26 = ssub.s32 %s20, 2
      %s27 = sadd.s32 %s20, 1
      %s28 = ssub.s32 %s20, %s27
      %p29 = scmp.eq.s32.totalorder %s28, 0
      %s31 = sadd.s32 %s30, 1
      %s32 = scalar_select %p29, %s30, %s31
      %p35 = pneg %p29
      %p36 = scmp.eq.s32.totalorder %s20, 1
      %p37 = por %p35, %p36
      %p38 = scmp.ne.s32.totalorder %s30, %s33
      %p39 = scmp.eq.s32.totalorder %s20, 0
      %p40 = por %p38, %p39
      %p41 = scmp.ne.s32.totalorder %s30, %s33
      %p42 = scmp.eq.s32.totalorder %s25, 1
      %p43 = por %p41, %p42
      %p44 = scmp.ne.s32.totalorder %s33, %s34
      %p45 = scmp.eq.s32.totalorder %s25, 0
      %p46 = por %p44, %p45
      %p47 = scmp.ne.s32.totalorder %s33, %s34
      %p48 = scmp.eq.s32.totalorder %s26, 1
      %p49 = por %p47, %p48
      %p51 = scmp.ne.s32.totalorder %s34, %s50
      %p52 = scmp.eq.s32.totalorder %s26, 0
      %p53 = por %p51, %p52
      %s54 = ssub.s32 %s20, %s27
      %p55 = scmp.eq.s32.totalorder %s54, 0
      %s57 = sadd.s32 %s56, 1
      %s58 = scalar_select %p55, %s56, %s57
      %p61 = pneg %p55
      %p62 = scmp.eq.s32.totalorder %s20, 1
      %p63 = por %p61, %p62
      %p64 = scmp.ne.s32.totalorder %s56, %s59
      %p65 = scmp.eq.s32.totalorder %s20, 0
      %p66 = por %p64, %p65
      %p67 = scmp.ne.s32.totalorder %s56, %s59
      %p68 = scmp.eq.s32.totalorder %s25, 1
      %p69 = por %p67, %p68
      %p70 = scmp.ne.s32.totalorder %s59, %s60
      %p71 = scmp.eq.s32.totalorder %s25, 0
      %p72 = por %p70, %p71
      %p73 = scmp.ne.s32.totalorder %s59, %s60
      %p74 = scmp.eq.s32.totalorder %s26, 1
      %p75 = por %p73, %p74
      %p77 = scmp.ne.s32.totalorder %s60, %s76
      %p78 = scmp.eq.s32.totalorder %s26, 0
      %p79 = por %p77, %p78
      %s81 = sadd.s32 %s80, 1
      %p84 = scmp.eq.s32.totalorder %s20, 1
      %p85 = scmp.ne.s32.totalorder %s80, %s82
      %p86 = scmp.eq.s32.totalorder %s20, 0
      %p87 = por %p85, %p86
      %p88 = scmp.ne.s32.totalorder %s80, %s82
      %p89 = scmp.eq.s32.totalorder %s25, 1
      %p90 = por %p88, %p89
      %p91 = scmp.ne.s32.totalorder %s82, %s83
      %p92 = scmp.eq.s32.totalorder %s25, 0
      %p93 = por %p91, %p92
      %p94 = scmp.ne.s32.totalorder %s82, %s83
      %p95 = scmp.eq.s32.totalorder %s26, 1
      %p96 = por %p94, %p95
      %p98 = scmp.ne.s32.totalorder %s83, %s97
      %p99 = scmp.eq.s32.totalorder %s26, 0
      %p100 = por %p98, %p99
      %s102 = sadd.s32 %s101, 1
      %p105 = scmp.eq.s32.totalorder %s20, 1
      %p106 = scmp.ne.s32.totalorder %s101, %s103
      %p107 = scmp.eq.s32.totalorder %s20, 0
      %p108 = por %p106, %p107
      %p109 = scmp.ne.s32.totalorder %s101, %s103
      %p110 = scmp.eq.s32.totalorder %s25, 1
      %p111 = por %p109, %p110
      %p112 = scmp.ne.s32.totalorder %s103, %s104
      %p113 = scmp.eq.s32.totalorder %s25, 0
      %p114 = por %p112, %p113
      %p115 = scmp.ne.s32.totalorder %s103, %s104
      %p116 = scmp.eq.s32.totalorder %s26, 1
      %p117 = por %p115, %p116
      %p119 = scmp.ne.s32.totalorder %s104, %s118
      %p120 = scmp.eq.s32.totalorder %s26, 0
      %p121 = por %p119, %p120
      %s122 = ssub.s32 %s20, %s27
      %p123 = scmp.eq.s32.totalorder %s122, 0
      %s125 = sadd.s32 %s124, 1
      %s126 = scalar_select %p123, %s124, %s125
      %p129 = pneg %p123
      %p130 = scmp.eq.s32.totalorder %s20, 1
      %p131 = por %p129, %p130
      %p132 = scmp.ne.s32.totalorder %s124, %s127
      %p133 = scmp.eq.s32.totalorder %s20, 0
      %p134 = por %p132, %p133
      %p135 = scmp.ne.s32.totalorder %s124, %s127
      %p136 = scmp.eq.s32.totalorder %s25, 1
      %p137 = por %p135, %p136
      %p138 = scmp.ne.s32.totalorder %s127, %s128
      %p139 = scmp.eq.s32.totalorder %s25, 0
      %p140 = por %p138, %p139
      %p141 = scmp.ne.s32.totalorder %s127, %s128
      %p142 = scmp.eq.s32.totalorder %s26, 1
      %p143 = por %p141, %p142
      %p145 = scmp.ne.s32.totalorder %s128, %s144
      %p146 = scmp.eq.s32.totalorder %s26, 0
      %p147 = por %p145, %p146
      %p148 = scmp.le.s32.totalorder 1, %s20
      %p149 = scmp.lt.s32.totalorder %s20, 3
      %p150 = pnand %p148, %p149
      %p151 = pneg %p150
      // Predicated region
      $region9: #{tpu_custom_call.1} parent=5 // pred_check
        _
      $region10: #{tpu_custom_call.1} parent=5 // pred_check_branch
        %153 = sbr.rel (%p150) target = $region12
      $region11: #{tpu_custom_call.1} parent=5 // pred_region
        %s154 = ssub.s32 %s20, 1
        // Predicated region
        $region13: #{tpu_custom_call.1} parent=11 // pred_check
          %p155 = pneg %p93
        $region14: #{tpu_custom_call.1} parent=11 // pred_check_branch
          %157 = sbr.rel (%p155) target = $region16
        $region15: #{tpu_custom_call.1} parent=11 // pred_region
          %s159 = ssub.s32 1024, 1024
          %160 = vsyncadd [#allocation6], %s159
          %s161 = sshll.u32 [#allocation7], 4
          %s162 = int_to_ptr.vmem [resolvable:$true] %s161
          %167 = dma.hbm_to_vmem [thread:$0]  %s2, 1024, %s162, [#allocation6], 64, 64, 4
        $region16: #{tpu_custom_call.1} parent=11 // pred_fallthru
          _
        // Predicated region
        $region17: #{tpu_custom_call.1} parent=11 // pred_check
          %p168 = pneg %p114
        $region18: #{tpu_custom_call.1} parent=11 // pred_check_branch
          %170 = sbr.rel (%p168) target = $region20
        $region19: #{tpu_custom_call.1} parent=11 // pred_region
          %s172 = ssub.s32 256, 256
          %173 = vsyncadd [#allocation9], %s172
          %s174 = sshll.u32 [#allocation8], 4
          %s175 = int_to_ptr.vmem [resolvable:$true] %s174
          %180 = dma.hbm_to_vmem [thread:$0]  %s3, 256, %s175, [#allocation9], 128, 128, 8
        $region20: #{tpu_custom_call.1} parent=11 // pred_fallthru
          _
      $region12: #{tpu_custom_call.1} parent=5 // pred_fallthru
        _
      %p181 = scmp.lt.s32.totalorder %s20, 2
      // Predicated region
      $region21: #{tpu_custom_call.1} parent=5 // pred_check
        %p182 = pneg %p181
      $region22: #{tpu_custom_call.1} parent=5 // pred_check_branch
        %184 = sbr.rel (%p182) target = $region24
      $region23: #{tpu_custom_call.1} parent=5 // pred_region
        // Predicated region
        $region25: #{tpu_custom_call.1} parent=23 // pred_check
          %p185 = pneg %p40
        $region26: #{tpu_custom_call.1} parent=23 // pred_check_branch
          %187 = sbr.rel (%p185) target = $region28
        $region27: #{tpu_custom_call.1} parent=23 // pred_region
          %s188 = sand.u32 %s30, 1
          %s189 = scalar_lea.sflag [#allocation3], %s188
          %s190 = sand.u32 %s30, 1
          %s191 = smul.addr %s190, 8
          %s192 = scalar_lea.vmem [#allocation2], %s191
          %s194 = ssub.s32 128, 128
          %195 = vsyncadd %s189, %s194
          %s196 = smul.addr %s20, 128
          %s197 = scalar_lea.hbm %s0, %s196
          %s199 = sshll.u32 %s192, 4
          %s200 = int_to_ptr.vmem [resolvable:$true] %s199
          %202 = dma.hbm_to_vmem [thread:$0]  %s197, 128, %s200, %s189
        $region28: #{tpu_custom_call.1} parent=23 // pred_fallthru
          _
        // Predicated region
        $region29: #{tpu_custom_call.1} parent=23 // pred_check
          %p203 = pneg %p66
        $region30: #{tpu_custom_call.1} parent=23 // pred_check_branch
          %205 = sbr.rel (%p203) target = $region32
        $region31: #{tpu_custom_call.1} parent=23 // pred_region
          %s206 = sand.u32 %s20, 1
          %s207 = scalar_lea.sflag [#allocation6], %s206
          %s208 = sand.u32 %s56, 1
          %s209 = smul.addr %s208, 8
          %s210 = scalar_lea.vmem [#allocation5], %s209
          %s212 = ssub.s32 128, 128
          %213 = vsyncadd %s207, %s212
          %s214 = smul.addr %s20, 128
          %s215 = scalar_lea.hbm %s1, %s214
          %s217 = sshll.u32 %s210, 4
          %s218 = int_to_ptr.vmem [resolvable:$true] %s217
          %220 = dma.hbm_to_vmem [thread:$0]  %s215, 128, %s218, %s207
        $region32: #{tpu_custom_call.1} parent=23 // pred_fallthru
          _
      $region24: #{tpu_custom_call.1} parent=5 // pred_fallthru
        _
      %p221 = scmp.le.s32.totalorder 1, %s20
      %p222 = scmp.lt.s32.totalorder %s20, 3
      %p223 = pnand %p221, %p222
      %p224 = pneg %p223
      // Predicated region
      $region33: #{tpu_custom_call.1} parent=5 // pred_check
        _
      $region34: #{tpu_custom_call.1} parent=5 // pred_check_branch
        %226 = sbr.rel (%p223) target = $region36
      $region35: #{tpu_custom_call.1} parent=5 // pred_region
        %s227 = ssub.s32 %s20, 1
        %s228 = sand.u32 %s33, 1
        %s229 = scalar_lea.sflag [#allocation3], %s228
        %s230 = sand.u32 %s33, 1
        %s231 = smul.addr %s230, 8
        %s232 = scalar_lea.vmem [#allocation2], %s231
        // Predicated region
        $region37: #{tpu_custom_call.1} parent=35 // pred_check
          %p233 = pneg %p46
        $region38: #{tpu_custom_call.1} parent=35 // pred_check_branch
          %235 = sbr.rel (%p233) target = $region40
        $region39: #{tpu_custom_call.1} parent=35 // pred_region
          %236 = dma.done %s229, 128
        $region40: #{tpu_custom_call.1} parent=35 // pred_fallthru
          _
        %s237 = sand.u32 %s25, 1
        %s238 = scalar_lea.sflag [#allocation6], %s237
        %s239 = sand.u32 %s59, 1
        %s240 = smul.addr %s239, 8
        %s241 = scalar_lea.vmem [#allocation5], %s240
        // Predicated region
        $region41: #{tpu_custom_call.1} parent=35 // pred_check
          %p242 = pneg %p72
        $region42: #{tpu_custom_call.1} parent=35 // pred_check_branch
          %244 = sbr.rel (%p242) target = $region44
        $region43: #{tpu_custom_call.1} parent=35 // pred_region
          %245 = dma.done %s238, 128
        $region44: #{tpu_custom_call.1} parent=35 // pred_fallthru
          _
        // Predicated region
        $region45: #{tpu_custom_call.1} parent=35 // pred_check
          %p246 = pneg %p93
        $region46: #{tpu_custom_call.1} parent=35 // pred_check_branch
          %248 = sbr.rel (%p246) target = $region48
        $region47: #{tpu_custom_call.1} parent=35 // pred_region
          %249 = dma.done [#allocation6], 1024
        $region48: #{tpu_custom_call.1} parent=35 // pred_fallthru
          _
        // Predicated region
        $region49: #{tpu_custom_call.1} parent=35 // pred_check
          %p250 = pneg %p114
        $region50: #{tpu_custom_call.1} parent=35 // pred_check_branch
          %252 = sbr.rel (%p250) target = $region52
        $region51: #{tpu_custom_call.1} parent=35 // pred_region
          %253 = dma.done [#allocation9], 256
        $region52: #{tpu_custom_call.1} parent=35 // pred_fallthru
          _
        %s254 = sand.u32 %s33, 1
        %s255 = scalar_lea.sflag [#allocation3], %s254
        %s256 = sand.u32 %s33, 1
        %s257 = smul.addr %s256, 8
        %s258 = scalar_lea.vmem [#allocation2], %s257
        %p259 = pneg %p46
        %p260 = pneg %p43
        %s261 = sand.u32 %s25, 1
        %s262 = scalar_lea.sflag [#allocation6], %s261
        %s263 = sand.u32 %s59, 1
        %s264 = smul.addr %s263, 8
        %s265 = scalar_lea.vmem [#allocation5], %s264
        %p266 = pneg %p72
        %p267 = pneg %p69
        %p268 = pneg %p93
        %p269 = pneg %p90
        %p270 = pneg %p114
        %p271 = pneg %p111
        %p272 = pneg %p140
        %p273 = pneg %p137
        %s274 = sand.u32 %s127, 1
        %s275 = scalar_lea.sflag [#allocation4], %s274
        %s276 = sand.u32 %s127, 1
        %s277 = smul.addr %s276, 8
        %s278 = scalar_lea.vmem [#allocation10], %s277
        %v280 = vld [vmem:[%s232] sm:$0xff]
        %281 = vmax.xlane.f32.xlu0 %v280
        %v282 = vpop.xlane.xlu0 %281
        %v283 = vsub.f32 %v280, %v282
        %v284 = vmul.f32 %v283, 1.442695
        %v285 = vpow.pop %v284
        %286 = vadd.xlane.f32.xlu0 %v285
        %v287 = vpop.xlane.xlu0 %286
        %v288 = vrcp.pop %v287
        %v289 = vmul.f32 -1.0, %v288
        %v290 = vpack.c.bf16 %v285, %v285
        %v291 = vld [vmem:[#allocation7] sm:$0xf]
        %v292 = vld [vmem:[#allocation7 + $0x4] sm:$0xf]
        %v293 = vld [vmem:[#allocation7 + $0x8] sm:$0xf]
        %v294 = vld [vmem:[#allocation7 + $0xc] sm:$0xf]
        %v295 = vld [vmem:[#allocation7 + $0x10] sm:$0xf]
        %v296 = vld [vmem:[#allocation7 + $0x14] sm:$0xf]
        %v297 = vld [vmem:[#allocation7 + $0x18] sm:$0xf]
        %v298 = vld [vmem:[#allocation7 + $0x1c] sm:$0xf]
        %v299 = vld [vmem:[#allocation7 + $0x20] sm:$0xf]
        %v300 = vld [vmem:[#allocation7 + $0x24] sm:$0xf]
        %v301 = vld [vmem:[#allocation7 + $0x28] sm:$0xf]
        %v302 = vld [vmem:[#allocation7 + $0x2c] sm:$0xf]
        %v303 = vld [vmem:[#allocation7 + $0x30] sm:$0xf]
        %v304 = vld [vmem:[#allocation7 + $0x34] sm:$0xf]
        %v305 = vld [vmem:[#allocation7 + $0x38] sm:$0xf]
        %v306 = vld [vmem:[#allocation7 + $0x3c] sm:$0xf]
        %v323 = vunpack.c.l.b16 %v291
        %v324 = vunpack.c.l.b16 %v292
        %v325 = vunpack.c.l.b16 %v293
        %v326 = vunpack.c.l.b16 %v294
        %v327 = vunpack.c.l.b16 %v295
        %v328 = vunpack.c.l.b16 %v296
        %v329 = vunpack.c.l.b16 %v297
        %v330 = vunpack.c.l.b16 %v298
        %v331 = vunpack.c.l.b16 %v299
        %v332 = vunpack.c.l.b16 %v300
        %v333 = vunpack.c.l.b16 %v301
        %v334 = vunpack.c.l.b16 %v302
        %v335 = vunpack.c.l.b16 %v303
        %v336 = vunpack.c.l.b16 %v304
        %v337 = vunpack.c.l.b16 %v305
        %v338 = vunpack.c.l.b16 %v306
        %v339 = vpack.c.b16 %v324, %v323
        %v340 = vpack.c.b16 %v326, %v325
        %v341 = vpack.c.b16 %v328, %v327
        %v342 = vpack.c.b16 %v330, %v329
        %v343 = vpack.c.b16 %v332, %v331
        %v344 = vpack.c.b16 %v334, %v333
        %v345 = vpack.c.b16 %v336, %v335
        %v346 = vpack.c.b16 %v338, %v337
        %355 = vmatprep.subr.bf16.mxu0 0
        %356 = vmatpush1.bf16.msra.mxu0 %v346
        %357 = vmatprep.subr.bf16.mxu0 0
        %358 = vmatpush1.bf16.msra.mxu0 %v345
        %359 = vmatprep.subr.bf16.mxu0 0
        %360 = vmatpush1.bf16.msra.mxu0 %v344
        %361 = vmatprep.subr.bf16.mxu0 0
        %362 = vmatpush1.bf16.msra.mxu0 %v343
        %363 = vmatprep.subr.bf16.mxu0 0
        %364 = vmatpush1.bf16.msra.mxu0 %v342
        %365 = vmatprep.subr.bf16.mxu0 0
        %366 = vmatpush1.bf16.msra.mxu0 %v341
        %367 = vmatprep.subr.bf16.mxu0 0
        %368 = vmatpush1.bf16.msra.mxu0 %v340
        %369 = vmatprep.subr.bf16.mxu0 0
        %370 = vmatpush1.bf16.msra.mxu0 %v339
        %371 = vmatprep.subr.bf16.mxu0 0
        %372 = vmatpush2.bf16.msra.mxu0 0
        %373 = vmatprep.subr.bf16.mxu0 0
        %374 = vmatpush2.bf16.msra.mxu0 0
        %375 = vmatprep.subr.bf16.mxu0 0
        %376 = vmatpush2.bf16.msra.mxu0 0
        %377 = vmatprep.subr.bf16.mxu0 0
        %378 = vmatpush2.bf16.msra.mxu0 0
        %379 = vmatprep.subr.bf16.mxu0 0
        %380 = vmatpush2.bf16.msra.mxu0 0
        %381 = vmatprep.subr.bf16.mxu0 0
        %382 = vmatpush2.bf16.msra.mxu0 0
        %383 = vmatprep.subr.bf16.mxu0 0
        %384 = vmatpush2.bf16.msra.mxu0 0
        %385 = vmatprep.subr.bf16.mxu0 0
        %386 = vmatpush2.bf16.msra.mxu0 0
        %387 = vmatprep.mubr.bf16.mxu0 0
        %388 = vmatmul.mubr.bf16.gmra.mxu0 %v290
        %v389 = vpop.f32.mrf.mxu0
        %v390 = vadd.f32 0.0, %v389
        %v391 = vpop.f32.mrf.mxu0
        %v392 = vpop.f32.mrf.mxu0
        %v393 = vpop.f32.mrf.mxu0
        %394 = vdwg.mxu0
        %v395 = vmul.f32 %v390, %v289
        %v396 = vld [vmem:[%s241] sm:$0xff]
        %v397 = vld [vmem:[#allocation8] sm:$0xff]
        %v398 = vld [vmem:[#allocation8 + $0x8] sm:$0x1]
        %400 = vset.pattern.permute.xlu0 0
        %401 = vperm.xlu0 %400, %v396
        %v402 = vpop.permute.xlu0 %401
        %v404 = vlaneseq
        %v405 = vshrl.u32 %v404, 7
        %v406 = vsub.s32 0, %v405
        %v407 = vrot.slane %v397, %v406
        %v408 = vsub.f32 %v402, %v407
        %v409 = vand.u32 2147483647, %v408
        %410 = vset.pattern.permute.xlu0 1
        %411 = vperm.xlu0 %410, %v396
        %v412 = vpop.permute.xlu0 %411
        %v414 = vlaneseq
        %v415 = vshrl.u32 %v414, 7
        %v416 = vsub.s32 1, %v415
        %v417 = vrot.slane %v397, %v416
        %v418 = vsub.f32 %v412, %v417
        %v419 = vand.u32 2147483647, %v418
        %v420 = vadd.f32 %v409, %v419
        %421 = vset.pattern.permute.xlu0 2
        %422 = vperm.xlu0 %421, %v396
        %v423 = vpop.permute.xlu0 %422
        %v425 = vlaneseq
        %v426 = vshrl.u32 %v425, 7
        %v427 = vsub.s32 2, %v426
        %v428 = vrot.slane %v397, %v427
        %v429 = vsub.f32 %v423, %v428
        %v430 = vand.u32 2147483647, %v429
        %v431 = vadd.f32 %v420, %v430
        %432 = vset.pattern.permute.xlu0 3
        %433 = vperm.xlu0 %432, %v396
        %v434 = vpop.permute.xlu0 %433
        %v436 = vlaneseq
        %v437 = vshrl.u32 %v436, 7
        %v438 = vsub.s32 3, %v437
        %v439 = vrot.slane %v397, %v438
        %v440 = vsub.f32 %v434, %v439
        %v441 = vand.u32 2147483647, %v440
        %v442 = vadd.f32 %v431, %v441
        %443 = vset.pattern.permute.xlu0 4
        %444 = vperm.xlu0 %443, %v396
        %v445 = vpop.permute.xlu0 %444
        %v447 = vlaneseq
        %v448 = vshrl.u32 %v447, 7
        %v449 = vsub.s32 4, %v448
        %v450 = vrot.slane %v397, %v449
        %v451 = vmax.f32 %v445, %v450
        %452 = vset.pattern.permute.xlu0 5
        %453 = vperm.xlu0 %452, %v396
        %v454 = vpop.permute.xlu0 %453
        %v456 = vlaneseq
        %v457 = vshrl.u32 %v456, 7
        %v458 = vsub.s32 5, %v457
        %v459 = vrot.slane %v397, %v458
        %v460 = vmax.f32 %v454, %v459
        %461 = vset.pattern.permute.xlu0 6
        %462 = vperm.xlu0 %461, %v396
        %v463 = vpop.permute.xlu0 %462
        %v465 = vlaneseq
        %v466 = vshrl.u32 %v465, 7
        %v467 = vsub.s32 6, %v466
        %v468 = vrot.slane %v397, %v467
        %v469 = vmin.f32 %v463, %v468
        %470 = vset.pattern.permute.xlu0 7
        %471 = vperm.xlu0 %470, %v396
        %v472 = vpop.permute.xlu0 %471
        %v474 = vlaneseq
        %v475 = vshrl.u32 %v474, 7
        %v476 = vsub.s32 7, %v475
        %v477 = vrot.slane %v397, %v476
        %v478 = vmin.f32 %v472, %v477
        %v479 = vsub.f32 %v469, %v451
        %v480 = vmax.f32 %v479, 0.0
        %v481 = vsub.f32 %v478, %v460
        %v482 = vmax.f32 %v481, 0.0
        %v483 = vmul.f32 %v480, %v482
        %484 = vset.pattern.permute.xlu0 8
        %485 = vperm.xlu0 %484, %v396
        %v486 = vpop.permute.xlu0 %485
        %v488 = vlaneseq
        %v489 = vshrl.u32 %v488, 7
        %v490 = vsub.s32 0, %v489
        %v491 = vrot.slane %v398, %v490
        %v492 = vadd.f32 %v486, %v491
        %v493 = vsub.f32 %v492, %v483
        %v494 = vadd.f32 %v493, 1e-07
        %v495 = vrcp.pop %v494
        %v496 = vmul.f32 %v483, %v495
        %v497 = vmin.f32 %v445, %v450
        %v498 = vmin.f32 %v454, %v459
        %v499 = vmax.f32 %v463, %v468
        %v500 = vmax.f32 %v472, %v477
        %v501 = vsub.f32 %v499, %v497
        %v502 = vsub.f32 %v500, %v498
        %v503 = vmul.f32 %v501, %v502
        %v504 = vsub.f32 %v503, %v493
        %v505 = vadd.f32 %v503, 1e-07
        %v506 = vrcp.pop %v505
        %v507 = vmul.f32 %v504, %v506
        %v508 = vsub.f32 %v507, %v496
        %v509 = vadd.f32 %v395, %v442
        %v510 = vadd.f32 %v509, %v508
        %511 = vst [vmem:[%s278] sm:$0xff] %v510
        %s512 = sand.u32 %s127, 1
        %s513 = scalar_lea.sflag [#allocation4], %s512
        %s514 = sand.u32 %s127, 1
        %s515 = smul.addr %s514, 8
        %s516 = scalar_lea.vmem [#allocation10], %s515
        // Predicated region
        $region53: #{tpu_custom_call.1} parent=35 // pred_check
          %p517 = pneg %p137
        $region54: #{tpu_custom_call.1} parent=35 // pred_check_branch
          %519 = sbr.rel (%p517) target = $region56
        $region55: #{tpu_custom_call.1} parent=35 // pred_region
          %s521 = ssub.s32 128, 128
          %522 = vsyncadd %s513, %s521
          %s523 = smul.addr %s25, 128
          %s524 = scalar_lea.hbm %s4, %s523
          %s526 = sshll.u32 %s516, 4
          %s527 = int_to_ptr.vmem [resolvable:$true] %s526
          %529 = dma.vmem_to_hbm [thread:$0]  %s527, 128, %s524, %s513
        $region56: #{tpu_custom_call.1} parent=35 // pred_fallthru
          _
      $region36: #{tpu_custom_call.1} parent=5 // pred_fallthru
        _
      %p530 = scmp.le.s32.totalorder 2, %s20
      // Predicated region
      $region57: #{tpu_custom_call.1} parent=5 // pred_check
        %p531 = pneg %p530
      $region58: #{tpu_custom_call.1} parent=5 // pred_check_branch
        %533 = sbr.rel (%p531) target = $region60
      $region59: #{tpu_custom_call.1} parent=5 // pred_region
        %s534 = ssub.s32 %s20, 2
        // Predicated region
        $region61: #{tpu_custom_call.1} parent=59 // pred_check
          %p535 = pneg %p143
        $region62: #{tpu_custom_call.1} parent=59 // pred_check_branch
          %537 = sbr.rel (%p535) target = $region64
        $region63: #{tpu_custom_call.1} parent=59 // pred_region
          %s538 = sand.u32 %s128, 1
          %s539 = scalar_lea.sflag [#allocation4], %s538
          %s540 = sand.u32 %s128, 1
          %s541 = smul.addr %s540, 8
          %s542 = scalar_lea.vmem [#allocation10], %s541
          %543 = dma.done %s539, 128
        $region64: #{tpu_custom_call.1} parent=59 // pred_fallthru
          _
      $region60: #{tpu_custom_call.1} parent=5 // pred_fallthru
        _
    $region6: #{tpu_custom_call.1} parent=1 // loop_footer
      %s24 = sadd.s32 1, %s20
    $region7: #{tpu_custom_call.1} parent=1 // loop_footer_branch
      %19 = sbr.rel target = $region3
    $region8: #{tpu_custom_call.1} parent=1 // loop_exit
      _
    %544 = vsyncpa [#allocation3], 1
    %s545 = scalar_lea.sflag [#allocation3], 1
    %546 = vsyncpa %s545, 1
    %547 = vsyncpa [#allocation6], 1
    %s548 = scalar_lea.sflag [#allocation6], 1
    %549 = vsyncpa %s548, 1
    %550 = vsyncpa [#allocation9], 1
    %551 = vsyncpa [#allocation4], 1
    %s552 = scalar_lea.sflag [#allocation4], 1
    %553 = vsyncpa %s552, 1

</llo_original>
